<compile_context>
chip_gen: v7x
topology: tpu7x:2x2x1
jax: 0.10.0
libtpu: 0.0.40
codegen_flags: <defaults>
</compile_context>

<pallas_src>
import jax
import jax.numpy as jnp
import numpy as np
from jax import lax
from jax.experimental import pallas as pl
from jax.experimental.pallas import tpu as pltpu


def lstm_feature_kernel(tok_ref, table_ref, whh_ref, wlin_ref, blin_ref, out_ref):
    # tok_ref:   [T*Bp, 1] int32   time-major, batch-padded token ids
    # table_ref: [Vp, 4H]  f32     embedding @ W_ih + (b_ih+b_hh), gate order (i,f,o,g)
    # whh_ref:   [H, 4H]   f32     gate order (i,f,o,g)
    # wlin_ref:  [H, Op]   f32     lane-padded linear weight
    # blin_ref:  [1, Op]   f32
    # out_ref:   [Bp, Op]  f32
    Bp = out_ref.shape[0]
    H = whh_ref.shape[0]
    TB = tok_ref.shape[0]
    T = TB // Bp
    Vp = table_ref.shape[0]
    H3 = 3 * H

    # In-kernel embedding/input-projection gather via lane-dense one-hot matmul:
    # one [T*Bp, Vp] x [Vp, 4H] MXU pass replaces the old embedding lookup,
    # the [T,B,E] intermediate, and the hoisted E-contraction matmul.
    toks = tok_ref[...]                                            # [TB, 1] i32
    vid = lax.broadcasted_iota(jnp.int32, (TB, Vp), 1)             # [TB, Vp]
    onehot = (vid == toks).astype(jnp.float32)                     # exact 0/1
    gx = jnp.dot(onehot, table_ref[...],
                 preferred_element_type=jnp.float32)               # [TB, 4H]

    whh = whh_ref[...]                                             # hoisted

    h = jnp.zeros((Bp, H), jnp.float32)
    c = jnp.zeros((Bp, H), jnp.float32)

    # Fully unrolled, store-free recurrence; h/c live in vregs.
    # gx row-slices are static and tile-aligned (each step = one (8,128) tile).
    for t in range(T):
        gates = gx[t * Bp:(t + 1) * Bp, :] + jnp.dot(
            h, whh, preferred_element_type=jnp.float32)            # [Bp, 4H]
        # gate layout (i, f, o, g): one batched sigmoid + one tanh (fewer EUP pushes)
        act = jax.nn.sigmoid(gates[:, :H3])
        g_g = jnp.tanh(gates[:, H3:])
        i_g = act[:, :H]
        f_g = act[:, H:2 * H]
        o_g = act[:, 2 * H:H3]
        c = f_g * c + i_g * g_g
        h = o_g * jnp.tanh(c)

    # relu(h_n[-1]); dropout1/dropout2 are identity (eval / p=0)
    feat = jnp.maximum(h, 0.0)
    out_ref[...] = (jnp.dot(feat, wlin_ref[...],
                            preferred_element_type=jnp.float32)
                    + blin_ref[...]).astype(out_ref.dtype)


def init_params(key, vocabulary_size, embedding_size, hidden_size, output_size):
    ks = jax.random.split(key, 7)
    s = 0.1
    return {
        "embedding": jax.random.normal(ks[0], (vocabulary_size, embedding_size),
                                       jnp.float32),
        # stored pre-transposed in standard PyTorch gate order (i, f, g, o)
        "w_ih": s * jax.random.normal(ks[1], (embedding_size, 4 * hidden_size),
                                      jnp.float32),
        "w_hh": s * jax.random.normal(ks[2], (hidden_size, 4 * hidden_size),
                                      jnp.float32),
        # b_ih + b_hh combined
        "bias": s * jax.random.normal(ks[3], (1, 4 * hidden_size), jnp.float32),
        "w_lin": s * jax.random.normal(ks[4], (hidden_size, output_size),
                                       jnp.float32),
        "b_lin": s * jax.random.normal(ks[5], (1, output_size), jnp.float32),
    }


def prepare_kernel_params(params):
    """One-time (init) prep: gate reorder, embedding@W_ih fold, lane padding.

    Not part of the per-call forward path."""
    V, _ = params["embedding"].shape
    H = params["w_hh"].shape[0]
    O = params["w_lin"].shape[1]

    # offline gate-column reorder: (i, f, g, o) -> (i, f, o, g)
    perm = np.concatenate([np.arange(0, 2 * H),
                           np.arange(3 * H, 4 * H),
                           np.arange(2 * H, 3 * H)])
    w_ih = params["w_ih"][:, perm]
    w_hh = params["w_hh"][:, perm]
    bias = params["bias"][:, perm]

    # fold embedding + input projection + bias into one gather table [V, 4H]
    table = params["embedding"] @ w_ih + bias
    Vp = ((V + 127) // 128) * 128          # lane-dense one-hot contraction dim
    table = jnp.pad(table, ((0, Vp - V), (0, 0)))

    Op = ((O + 127) // 128) * 128          # lane-dense output width
    w_lin = jnp.pad(params["w_lin"], ((0, 0), (0, Op - O)))
    b_lin = jnp.pad(params["b_lin"], ((0, 0), (0, Op - O)))

    return {"gx_table": table, "w_hh": w_hh, "w_lin": w_lin, "b_lin": b_lin,
            "out_size": O}


def lstm_feature_extraction(tokens, prep):
    B, T = tokens.shape
    O = prep["out_size"]
    Op = prep["w_lin"].shape[1]
    Bp = ((B + 7) // 8) * 8                # sublane-aligned batch

    # only glue left: pad/transpose/flatten the tiny int32 token array
    tok = jnp.pad(tokens.astype(jnp.int32), ((0, Bp - B), (0, 0)))   # [Bp, T]
    tok = jnp.transpose(tok).reshape(T * Bp, 1)                      # time-major

    out = pl.pallas_call(
        lstm_feature_kernel,
        out_shape=jax.ShapeDtypeStruct((Bp, Op), jnp.float32),
        in_specs=[pl.BlockSpec(memory_space=pltpu.MemorySpace.VMEM)] * 5,
        out_specs=pl.BlockSpec(memory_space=pltpu.MemorySpace.VMEM),
    )(tok, prep["gx_table"], prep["w_hh"], prep["w_lin"], prep["b_lin"])

    return out[:B, :O]


def reference_jax(tokens, params):
    x = jnp.take(params["embedding"], tokens, axis=0)  # [B, T, E]
    B = tokens.shape[0]
    H = params["w_hh"].shape[0]

    def step(carry, x_t):
        h, c = carry
        gates = x_t @ params["w_ih"] + h @ params["w_hh"] + params["bias"]
        i = jax.nn.sigmoid(gates[:, 0:H])
        f = jax.nn.sigmoid(gates[:, H:2 * H])
        g = jnp.tanh(gates[:, 2 * H:3 * H])
        o = jax.nn.sigmoid(gates[:, 3 * H:4 * H])
        c = f * c + i * g
        h = o * jnp.tanh(c)
        return (h, c), None

    h0 = jnp.zeros((B, H), jnp.float32)
    (h, _), _ = lax.scan(step, (h0, h0), jnp.transpose(x, (1, 0, 2)))
    return jnp.maximum(h, 0.0) @ params["w_lin"] + params["b_lin"]


if __name__ == "__main__":
    vocabulary_size, embedding_size, hidden_size, output_size = 50, 16, 32, 8
    B, T = 2, 8

    key = jax.random.PRNGKey(0)
    k_tok, k_par = jax.random.split(key)
    tokens = jax.random.randint(k_tok, (B, T), 0, vocabulary_size, jnp.int32)
    params = init_params(k_par, vocabulary_size, embedding_size, hidden_size,
                         output_size)

    prep = prepare_kernel_params(params)   # one-time init work, not per-call

    out = jax.block_until_ready(lstm_feature_extraction(tokens, prep))
    ref = jax.block_until_ready(reference_jax(tokens, params))
    np.testing.assert_allclose(np.asarray(out), np.asarray(ref),
                               rtol=1e-5, atol=1e-5)
    print("KERNEL_OK")
</pallas_src>

<mosaic_0001>
module attributes {stable_mosaic.version = 11 : i64} {
  func.func @lstm_feature_kernel(%arg0: memref<64x1xi32, #tpu.memory_space<vmem>>, %arg1: memref<128x128xf32, #tpu.memory_space<vmem>>, %arg2: memref<32x128xf32, #tpu.memory_space<vmem>>, %arg3: memref<32x128xf32, #tpu.memory_space<vmem>>, %arg4: memref<1x128xf32, #tpu.memory_space<vmem>>, %arg5: memref<8x128xf32, #tpu.memory_space<vmem>>) attributes {dimension_semantics = [], scalar_prefetch = 0 : i64, scratch_operands = 0 : i64, tpu.core_type = #tpu.core_type<tc>} {
    %c0 = arith.constant 0 : index
    %c0_0 = arith.constant 0 : index
    %0 = vector.load %arg0[%c0, %c0_0] : memref<64x1xi32, #tpu.memory_space<vmem>>, vector<64x1xi32>
    %1 = tpu.iota {dimensions = array<i32: 1>} : vector<64x128xi32>
    %2 = vector.broadcast %0 : vector<64x1xi32> to vector<64x128xi32>
    %3 = arith.cmpi eq, %1, %2 : vector<64x128xi32>
    %4 = arith.extui %3 : vector<64x128xi1> to vector<64x128xi32>
    %5 = arith.sitofp %4 : vector<64x128xi32> to vector<64x128xf32>
    %c0_1 = arith.constant 0 : index
    %c0_2 = arith.constant 0 : index
    %6 = vector.load %arg1[%c0_1, %c0_2] : memref<128x128xf32, #tpu.memory_space<vmem>>, vector<128x128xf32>
    %cst = arith.constant dense<0.000000e+00> : vector<64x128xf32>
    %7 = tpu.matmul %5, %6, %cst {dimension_numbers = #tpu.dot_dimension_numbers<[1], [0], [0], [1], [0, 0, 1, 1], [], []>} : vector<64x128xf32>, vector<128x128xf32>, vector<64x128xf32> -> vector<64x128xf32>
    %c0_3 = arith.constant 0 : index
    %c0_4 = arith.constant 0 : index
    %8 = vector.load %arg2[%c0_3, %c0_4] : memref<32x128xf32, #tpu.memory_space<vmem>>, vector<32x128xf32>
    %cst_5 = arith.constant 0.000000e+00 : f32
    %9 = vector.broadcast %cst_5 : f32 to vector<8x32xf32>
    %cst_6 = arith.constant 0.000000e+00 : f32
    %10 = vector.broadcast %cst_6 : f32 to vector<8x32xf32>
    %11 = vector.extract_strided_slice %7 {offsets = [0, 0], sizes = [8, 128], strides = [1, 1]} : vector<64x128xf32> to vector<8x128xf32>
    %cst_7 = arith.constant dense<0.000000e+00> : vector<8x128xf32>
    %12 = tpu.matmul %9, %8, %cst_7 {dimension_numbers = #tpu.dot_dimension_numbers<[1], [0], [0], [1], [0, 0, 1, 1], [], []>} : vector<8x32xf32>, vector<32x128xf32>, vector<8x128xf32> -> vector<8x128xf32>
    %13 = arith.addf %11, %12 : vector<8x128xf32>
    %14 = vector.extract_strided_slice %13 {offsets = [0, 0], sizes = [8, 96], strides = [1, 1]} : vector<8x128xf32> to vector<8x96xf32>
    %15 = arith.negf %14 : vector<8x96xf32>
    %16 = math.exp %15 : vector<8x96xf32>
    %cst_8 = arith.constant 1.000000e+00 : f32
    %17 = vector.broadcast %cst_8 : f32 to vector<8x96xf32>
    %18 = arith.addf %17, %16 : vector<8x96xf32>
    %19 = arith.divf %17, %18 : vector<8x96xf32>
    %20 = vector.extract_strided_slice %13 {offsets = [0, 96], sizes = [8, 32], strides = [1, 1]} : vector<8x128xf32> to vector<8x32xf32>
    %21 = math.tanh %20 : vector<8x32xf32>
    %22 = vector.extract_strided_slice %19 {offsets = [0, 0], sizes = [8, 32], strides = [1, 1]} : vector<8x96xf32> to vector<8x32xf32>
    %23 = vector.extract_strided_slice %19 {offsets = [0, 32], sizes = [8, 32], strides = [1, 1]} : vector<8x96xf32> to vector<8x32xf32>
    %24 = vector.extract_strided_slice %19 {offsets = [0, 64], sizes = [8, 32], strides = [1, 1]} : vector<8x96xf32> to vector<8x32xf32>
    %25 = arith.mulf %23, %10 : vector<8x32xf32>
    %26 = arith.mulf %22, %21 : vector<8x32xf32>
    %27 = arith.addf %25, %26 : vector<8x32xf32>
    %28 = math.tanh %27 : vector<8x32xf32>
    %29 = arith.mulf %24, %28 : vector<8x32xf32>
    %30 = vector.extract_strided_slice %7 {offsets = [8, 0], sizes = [8, 128], strides = [1, 1]} : vector<64x128xf32> to vector<8x128xf32>
    %cst_9 = arith.constant dense<0.000000e+00> : vector<8x128xf32>
    %31 = tpu.matmul %29, %8, %cst_9 {dimension_numbers = #tpu.dot_dimension_numbers<[1], [0], [0], [1], [0, 0, 1, 1], [], []>} : vector<8x32xf32>, vector<32x128xf32>, vector<8x128xf32> -> vector<8x128xf32>
    %32 = arith.addf %30, %31 : vector<8x128xf32>
    %33 = vector.extract_strided_slice %32 {offsets = [0, 0], sizes = [8, 96], strides = [1, 1]} : vector<8x128xf32> to vector<8x96xf32>
    %34 = arith.negf %33 : vector<8x96xf32>
    %35 = math.exp %34 : vector<8x96xf32>
    %cst_10 = arith.constant 1.000000e+00 : f32
    %36 = vector.broadcast %cst_10 : f32 to vector<8x96xf32>
    %37 = arith.addf %36, %35 : vector<8x96xf32>
    %38 = arith.divf %36, %37 : vector<8x96xf32>
    %39 = vector.extract_strided_slice %32 {offsets = [0, 96], sizes = [8, 32], strides = [1, 1]} : vector<8x128xf32> to vector<8x32xf32>
    %40 = math.tanh %39 : vector<8x32xf32>
    %41 = vector.extract_strided_slice %38 {offsets = [0, 0], sizes = [8, 32], strides = [1, 1]} : vector<8x96xf32> to vector<8x32xf32>
    %42 = vector.extract_strided_slice %38 {offsets = [0, 32], sizes = [8, 32], strides = [1, 1]} : vector<8x96xf32> to vector<8x32xf32>
    %43 = vector.extract_strided_slice %38 {offsets = [0, 64], sizes = [8, 32], strides = [1, 1]} : vector<8x96xf32> to vector<8x32xf32>
    %44 = arith.mulf %42, %27 : vector<8x32xf32>
    %45 = arith.mulf %41, %40 : vector<8x32xf32>
    %46 = arith.addf %44, %45 : vector<8x32xf32>
    %47 = math.tanh %46 : vector<8x32xf32>
    %48 = arith.mulf %43, %47 : vector<8x32xf32>
    %49 = vector.extract_strided_slice %7 {offsets = [16, 0], sizes = [8, 128], strides = [1, 1]} : vector<64x128xf32> to vector<8x128xf32>
    %cst_11 = arith.constant dense<0.000000e+00> : vector<8x128xf32>
    %50 = tpu.matmul %48, %8, %cst_11 {dimension_numbers = #tpu.dot_dimension_numbers<[1], [0], [0], [1], [0, 0, 1, 1], [], []>} : vector<8x32xf32>, vector<32x128xf32>, vector<8x128xf32> -> vector<8x128xf32>
    %51 = arith.addf %49, %50 : vector<8x128xf32>
    %52 = vector.extract_strided_slice %51 {offsets = [0, 0], sizes = [8, 96], strides = [1, 1]} : vector<8x128xf32> to vector<8x96xf32>
    %53 = arith.negf %52 : vector<8x96xf32>
    %54 = math.exp %53 : vector<8x96xf32>
    %cst_12 = arith.constant 1.000000e+00 : f32
    %55 = vector.broadcast %cst_12 : f32 to vector<8x96xf32>
    %56 = arith.addf %55, %54 : vector<8x96xf32>
    %57 = arith.divf %55, %56 : vector<8x96xf32>
    %58 = vector.extract_strided_slice %51 {offsets = [0, 96], sizes = [8, 32], strides = [1, 1]} : vector<8x128xf32> to vector<8x32xf32>
    %59 = math.tanh %58 : vector<8x32xf32>
    %60 = vector.extract_strided_slice %57 {offsets = [0, 0], sizes = [8, 32], strides = [1, 1]} : vector<8x96xf32> to vector<8x32xf32>
    %61 = vector.extract_strided_slice %57 {offsets = [0, 32], sizes = [8, 32], strides = [1, 1]} : vector<8x96xf32> to vector<8x32xf32>
    %62 = vector.extract_strided_slice %57 {offsets = [0, 64], sizes = [8, 32], strides = [1, 1]} : vector<8x96xf32> to vector<8x32xf32>
    %63 = arith.mulf %61, %46 : vector<8x32xf32>
    %64 = arith.mulf %60, %59 : vector<8x32xf32>
    %65 = arith.addf %63, %64 : vector<8x32xf32>
    %66 = math.tanh %65 : vector<8x32xf32>
    %67 = arith.mulf %62, %66 : vector<8x32xf32>
    %68 = vector.extract_strided_slice %7 {offsets = [24, 0], sizes = [8, 128], strides = [1, 1]} : vector<64x128xf32> to vector<8x128xf32>
    %cst_13 = arith.constant dense<0.000000e+00> : vector<8x128xf32>
    %69 = tpu.matmul %67, %8, %cst_13 {dimension_numbers = #tpu.dot_dimension_numbers<[1], [0], [0], [1], [0, 0, 1, 1], [], []>} : vector<8x32xf32>, vector<32x128xf32>, vector<8x128xf32> -> vector<8x128xf32>
    %70 = arith.addf %68, %69 : vector<8x128xf32>
    %71 = vector.extract_strided_slice %70 {offsets = [0, 0], sizes = [8, 96], strides = [1, 1]} : vector<8x128xf32> to vector<8x96xf32>
    %72 = arith.negf %71 : vector<8x96xf32>
    %73 = math.exp %72 : vector<8x96xf32>
    %cst_14 = arith.constant 1.000000e+00 : f32
    %74 = vector.broadcast %cst_14 : f32 to vector<8x96xf32>
    %75 = arith.addf %74, %73 : vector<8x96xf32>
    %76 = arith.divf %74, %75 : vector<8x96xf32>
    %77 = vector.extract_strided_slice %70 {offsets = [0, 96], sizes = [8, 32], strides = [1, 1]} : vector<8x128xf32> to vector<8x32xf32>
    %78 = math.tanh %77 : vector<8x32xf32>
    %79 = vector.extract_strided_slice %76 {offsets = [0, 0], sizes = [8, 32], strides = [1, 1]} : vector<8x96xf32> to vector<8x32xf32>
    %80 = vector.extract_strided_slice %76 {offsets = [0, 32], sizes = [8, 32], strides = [1, 1]} : vector<8x96xf32> to vector<8x32xf32>
    %81 = vector.extract_strided_slice %76 {offsets = [0, 64], sizes = [8, 32], strides = [1, 1]} : vector<8x96xf32> to vector<8x32xf32>
    %82 = arith.mulf %80, %65 : vector<8x32xf32>
    %83 = arith.mulf %79, %78 : vector<8x32xf32>
    %84 = arith.addf %82, %83 : vector<8x32xf32>
    %85 = math.tanh %84 : vector<8x32xf32>
    %86 = arith.mulf %81, %85 : vector<8x32xf32>
    %87 = vector.extract_strided_slice %7 {offsets = [32, 0], sizes = [8, 128], strides = [1, 1]} : vector<64x128xf32> to vector<8x128xf32>
    %cst_15 = arith.constant dense<0.000000e+00> : vector<8x128xf32>
    %88 = tpu.matmul %86, %8, %cst_15 {dimension_numbers = #tpu.dot_dimension_numbers<[1], [0], [0], [1], [0, 0, 1, 1], [], []>} : vector<8x32xf32>, vector<32x128xf32>, vector<8x128xf32> -> vector<8x128xf32>
    %89 = arith.addf %87, %88 : vector<8x128xf32>
    %90 = vector.extract_strided_slice %89 {offsets = [0, 0], sizes = [8, 96], strides = [1, 1]} : vector<8x128xf32> to vector<8x96xf32>
    %91 = arith.negf %90 : vector<8x96xf32>
    %92 = math.exp %91 : vector<8x96xf32>
    %cst_16 = arith.constant 1.000000e+00 : f32
    %93 = vector.broadcast %cst_16 : f32 to vector<8x96xf32>
    %94 = arith.addf %93, %92 : vector<8x96xf32>
    %95 = arith.divf %93, %94 : vector<8x96xf32>
    %96 = vector.extract_strided_slice %89 {offsets = [0, 96], sizes = [8, 32], strides = [1, 1]} : vector<8x128xf32> to vector<8x32xf32>
    %97 = math.tanh %96 : vector<8x32xf32>
    %98 = vector.extract_strided_slice %95 {offsets = [0, 0], sizes = [8, 32], strides = [1, 1]} : vector<8x96xf32> to vector<8x32xf32>
    %99 = vector.extract_strided_slice %95 {offsets = [0, 32], sizes = [8, 32], strides = [1, 1]} : vector<8x96xf32> to vector<8x32xf32>
    %100 = vector.extract_strided_slice %95 {offsets = [0, 64], sizes = [8, 32], strides = [1, 1]} : vector<8x96xf32> to vector<8x32xf32>
    %101 = arith.mulf %99, %84 : vector<8x32xf32>
    %102 = arith.mulf %98, %97 : vector<8x32xf32>
    %103 = arith.addf %101, %102 : vector<8x32xf32>
    %104 = math.tanh %103 : vector<8x32xf32>
    %105 = arith.mulf %100, %104 : vector<8x32xf32>
    %106 = vector.extract_strided_slice %7 {offsets = [40, 0], sizes = [8, 128], strides = [1, 1]} : vector<64x128xf32> to vector<8x128xf32>
    %cst_17 = arith.constant dense<0.000000e+00> : vector<8x128xf32>
    %107 = tpu.matmul %105, %8, %cst_17 {dimension_numbers = #tpu.dot_dimension_numbers<[1], [0], [0], [1], [0, 0, 1, 1], [], []>} : vector<8x32xf32>, vector<32x128xf32>, vector<8x128xf32> -> vector<8x128xf32>
    %108 = arith.addf %106, %107 : vector<8x128xf32>
    %109 = vector.extract_strided_slice %108 {offsets = [0, 0], sizes = [8, 96], strides = [1, 1]} : vector<8x128xf32> to vector<8x96xf32>
    %110 = arith.negf %109 : vector<8x96xf32>
    %111 = math.exp %110 : vector<8x96xf32>
    %cst_18 = arith.constant 1.000000e+00 : f32
    %112 = vector.broadcast %cst_18 : f32 to vector<8x96xf32>
    %113 = arith.addf %112, %111 : vector<8x96xf32>
    %114 = arith.divf %112, %113 : vector<8x96xf32>
    %115 = vector.extract_strided_slice %108 {offsets = [0, 96], sizes = [8, 32], strides = [1, 1]} : vector<8x128xf32> to vector<8x32xf32>
    %116 = math.tanh %115 : vector<8x32xf32>
    %117 = vector.extract_strided_slice %114 {offsets = [0, 0], sizes = [8, 32], strides = [1, 1]} : vector<8x96xf32> to vector<8x32xf32>
    %118 = vector.extract_strided_slice %114 {offsets = [0, 32], sizes = [8, 32], strides = [1, 1]} : vector<8x96xf32> to vector<8x32xf32>
    %119 = vector.extract_strided_slice %114 {offsets = [0, 64], sizes = [8, 32], strides = [1, 1]} : vector<8x96xf32> to vector<8x32xf32>
    %120 = arith.mulf %118, %103 : vector<8x32xf32>
    %121 = arith.mulf %117, %116 : vector<8x32xf32>
    %122 = arith.addf %120, %121 : vector<8x32xf32>
    %123 = math.tanh %122 : vector<8x32xf32>
    %124 = arith.mulf %119, %123 : vector<8x32xf32>
    %125 = vector.extract_strided_slice %7 {offsets = [48, 0], sizes = [8, 128], strides = [1, 1]} : vector<64x128xf32> to vector<8x128xf32>
    %cst_19 = arith.constant dense<0.000000e+00> : vector<8x128xf32>
    %126 = tpu.matmul %124, %8, %cst_19 {dimension_numbers = #tpu.dot_dimension_numbers<[1], [0], [0], [1], [0, 0, 1, 1], [], []>} : vector<8x32xf32>, vector<32x128xf32>, vector<8x128xf32> -> vector<8x128xf32>
    %127 = arith.addf %125, %126 : vector<8x128xf32>
    %128 = vector.extract_strided_slice %127 {offsets = [0, 0], sizes = [8, 96], strides = [1, 1]} : vector<8x128xf32> to vector<8x96xf32>
    %129 = arith.negf %128 : vector<8x96xf32>
    %130 = math.exp %129 : vector<8x96xf32>
    %cst_20 = arith.constant 1.000000e+00 : f32
    %131 = vector.broadcast %cst_20 : f32 to vector<8x96xf32>
    %132 = arith.addf %131, %130 : vector<8x96xf32>
    %133 = arith.divf %131, %132 : vector<8x96xf32>
    %134 = vector.extract_strided_slice %127 {offsets = [0, 96], sizes = [8, 32], strides = [1, 1]} : vector<8x128xf32> to vector<8x32xf32>
    %135 = math.tanh %134 : vector<8x32xf32>
    %136 = vector.extract_strided_slice %133 {offsets = [0, 0], sizes = [8, 32], strides = [1, 1]} : vector<8x96xf32> to vector<8x32xf32>
    %137 = vector.extract_strided_slice %133 {offsets = [0, 32], sizes = [8, 32], strides = [1, 1]} : vector<8x96xf32> to vector<8x32xf32>
    %138 = vector.extract_strided_slice %133 {offsets = [0, 64], sizes = [8, 32], strides = [1, 1]} : vector<8x96xf32> to vector<8x32xf32>
    %139 = arith.mulf %137, %122 : vector<8x32xf32>
    %140 = arith.mulf %136, %135 : vector<8x32xf32>
    %141 = arith.addf %139, %140 : vector<8x32xf32>
    %142 = math.tanh %141 : vector<8x32xf32>
    %143 = arith.mulf %138, %142 : vector<8x32xf32>
    %144 = vector.extract_strided_slice %7 {offsets = [56, 0], sizes = [8, 128], strides = [1, 1]} : vector<64x128xf32> to vector<8x128xf32>
    %cst_21 = arith.constant dense<0.000000e+00> : vector<8x128xf32>
    %145 = tpu.matmul %143, %8, %cst_21 {dimension_numbers = #tpu.dot_dimension_numbers<[1], [0], [0], [1], [0, 0, 1, 1], [], []>} : vector<8x32xf32>, vector<32x128xf32>, vector<8x128xf32> -> vector<8x128xf32>
    %146 = arith.addf %144, %145 : vector<8x128xf32>
    %147 = vector.extract_strided_slice %146 {offsets = [0, 0], sizes = [8, 96], strides = [1, 1]} : vector<8x128xf32> to vector<8x96xf32>
    %148 = arith.negf %147 : vector<8x96xf32>
    %149 = math.exp %148 : vector<8x96xf32>
    %cst_22 = arith.constant 1.000000e+00 : f32
    %150 = vector.broadcast %cst_22 : f32 to vector<8x96xf32>
    %151 = arith.addf %150, %149 : vector<8x96xf32>
    %152 = arith.divf %150, %151 : vector<8x96xf32>
    %153 = vector.extract_strided_slice %146 {offsets = [0, 96], sizes = [8, 32], strides = [1, 1]} : vector<8x128xf32> to vector<8x32xf32>
    %154 = math.tanh %153 : vector<8x32xf32>
    %155 = vector.extract_strided_slice %152 {offsets = [0, 0], sizes = [8, 32], strides = [1, 1]} : vector<8x96xf32> to vector<8x32xf32>
    %156 = vector.extract_strided_slice %152 {offsets = [0, 32], sizes = [8, 32], strides = [1, 1]} : vector<8x96xf32> to vector<8x32xf32>
    %157 = vector.extract_strided_slice %152 {offsets = [0, 64], sizes = [8, 32], strides = [1, 1]} : vector<8x96xf32> to vector<8x32xf32>
    %158 = arith.mulf %156, %141 : vector<8x32xf32>
    %159 = arith.mulf %155, %154 : vector<8x32xf32>
    %160 = arith.addf %158, %159 : vector<8x32xf32>
    %161 = math.tanh %160 : vector<8x32xf32>
    %162 = arith.mulf %157, %161 : vector<8x32xf32>
    %cst_23 = arith.constant 0.000000e+00 : f32
    %163 = vector.broadcast %cst_23 : f32 to vector<8x32xf32>
    %164 = arith.maximumf %162, %163 : vector<8x32xf32>
    %c0_24 = arith.constant 0 : index
    %c0_25 = arith.constant 0 : index
    %165 = vector.load %arg3[%c0_24, %c0_25] : memref<32x128xf32, #tpu.memory_space<vmem>>, vector<32x128xf32>
    %cst_26 = arith.constant dense<0.000000e+00> : vector<8x128xf32>
    %166 = tpu.matmul %164, %165, %cst_26 {dimension_numbers = #tpu.dot_dimension_numbers<[1], [0], [0], [1], [0, 0, 1, 1], [], []>} : vector<8x32xf32>, vector<32x128xf32>, vector<8x128xf32> -> vector<8x128xf32>
    %c0_27 = arith.constant 0 : index
    %c0_28 = arith.constant 0 : index
    %167 = vector.load %arg4[%c0_27, %c0_28] : memref<1x128xf32, #tpu.memory_space<vmem>>, vector<1x128xf32>
    %168 = vector.broadcast %167 : vector<1x128xf32> to vector<8x128xf32>
    %169 = arith.addf %166, %168 : vector<8x128xf32>
    %c0_29 = arith.constant 0 : index
    %c0_30 = arith.constant 0 : index
    %170 = vector.load %arg5[%c0_29, %c0_30] : memref<8x128xf32, #tpu.memory_space<vmem>>, vector<8x128xf32>
    tpu.vector_store %arg5[%c0_29, %c0_30], %169 {strides = array<i32>} : memref<8x128xf32, #tpu.memory_space<vmem>>, vector<8x128xf32>,
    return
  }
}

</mosaic_0001>

<llo_original>
// kernel: tpu_custom_call.1
$region0: #{tpu_custom_call.1}
  #allocation0 [shape = 'u32[]', space=smem, size = 0x4, offset = 0x4, fixed_abs, tag = 'smem constant byte address 0x4 - core index']
  #allocation1 [shape = 'u32[144,128]{1,0:T(1,128)}', space=vmem, size = 0x12000, scoped, tag = 'internal scratch']
  %s0 = inlined_call_operand.vmem [shape: s32[64,1], index: 0, kind: input, shape index: {}]
  %s1 = inlined_call_operand.hbm [shape: f32[128,128], index: 1, kind: input, shape index: {}]
  %s2 = inlined_call_operand.vmem [shape: f32[32,128], index: 2, kind: input, shape index: {}]
  %s3 = inlined_call_operand.vmem [shape: f32[32,128], index: 3, kind: input, shape index: {}]
  %s4 = inlined_call_operand.vmem [shape: f32[1,128], index: 4, kind: input, shape index: {}]
  %s5 = inlined_call_operand.hbm [shape: f32[8,128], index: 5, kind: output, shape index: {}]
  %s6 = sld [smem:[#allocation0]]
  $region34: #{tpu_custom_call.1} parent=0
    _
  %s8 = ssub.s32 1, %s6
  %s9 = scalar_select 0, %s8, %s6
  $region1: #{tpu_custom_call.1} parent=0
    #allocation2 [shape = 'u8[65536]{0}', space=vmem, size = 0x10000, scoped, tag = 'input window, operand 1, single buffered']
    #allocation3 [shape = 's32[1]{0}', space=sflag, size = 0x4, scoped, tag = 'scoped memory for tpu_custom_call.1']
    #allocation4 [shape = 's32[1]{0}', space=sflag, size = 0x4, scoped, tag = 'scoped memory for tpu_custom_call.1']
    #allocation5 [shape = 'u8[4096]{0}', space=vmem, size = 0x1000, scoped, tag = 'output window, operand 0, single buffered']
    %10 = vsyncpa [#allocation3], 0
    %11 = vsyncpa [#allocation4], 0
    // Predicated region
    $region2: #{tpu_custom_call.1} parent=1 // pred_check
      _
    $region3: #{tpu_custom_call.1} parent=1 // pred_check_branch
      %13 = sbr.rel (0) target = $region5
    $region4: #{tpu_custom_call.1} parent=1 // pred_region
      _
    $region5: #{tpu_custom_call.1} parent=1 // pred_fallthru
      _
    // Predicated region
    $region6: #{tpu_custom_call.1} parent=1 // pred_check
      _
    $region7: #{tpu_custom_call.1} parent=1 // pred_check_branch
      %15 = sbr.rel (0) target = $region9
    $region8: #{tpu_custom_call.1} parent=1 // pred_region
      %s17 = ssub.s32 2048, 2048
      %18 = vsyncadd [#allocation3], %s17
      %s19 = sshll.u32 [#allocation2], 4
      %s20 = int_to_ptr.vmem [resolvable:$true] %s19
      %25 = dma.hbm_to_vmem [thread:$0]  %s1, 2048, %s20, [#allocation3], 128, 128, 8
    $region9: #{tpu_custom_call.1} parent=1 // pred_fallthru
      _
    // Predicated region
    $region10: #{tpu_custom_call.1} parent=1 // pred_check
      _
    $region11: #{tpu_custom_call.1} parent=1 // pred_check_branch
      %27 = sbr.rel (0) target = $region13
    $region12: #{tpu_custom_call.1} parent=1 // pred_region
      _
    $region13: #{tpu_custom_call.1} parent=1 // pred_fallthru
      _
    // Predicated region
    $region14: #{tpu_custom_call.1} parent=1 // pred_check
      _
    $region15: #{tpu_custom_call.1} parent=1 // pred_check_branch
      %29 = sbr.rel (0) target = $region17
    $region16: #{tpu_custom_call.1} parent=1 // pred_region
      _
    $region17: #{tpu_custom_call.1} parent=1 // pred_fallthru
      _
    // Predicated region
    $region18: #{tpu_custom_call.1} parent=1 // pred_check
      _
    $region19: #{tpu_custom_call.1} parent=1 // pred_check_branch
      %31 = sbr.rel (0) target = $region21
    $region20: #{tpu_custom_call.1} parent=1 // pred_region
      _
    $region21: #{tpu_custom_call.1} parent=1 // pred_fallthru
      _
    // Predicated region
    $region22: #{tpu_custom_call.1} parent=1 // pred_check
      _
    $region23: #{tpu_custom_call.1} parent=1 // pred_check_branch
      %33 = sbr.rel (0) target = $region25
    $region24: #{tpu_custom_call.1} parent=1 // pred_region
      %34 = dma.done [#allocation3], 2048
    $region25: #{tpu_custom_call.1} parent=1 // pred_fallthru
      _
    %v35 = vld [vmem:[%s0] sm:$0xff]
    %v36 = vld [vmem:[%s0 + $0x8] sm:$0xff]
    %v37 = vld [vmem:[%s0 + $0x10] sm:$0xff]
    %v38 = vld [vmem:[%s0 + $0x18] sm:$0xff]
    %v39 = vld [vmem:[%s0 + $0x20] sm:$0xff]
    %v40 = vld [vmem:[%s0 + $0x28] sm:$0xff]
    %v41 = vld [vmem:[%s0 + $0x30] sm:$0xff]
    %v42 = vld [vmem:[%s0 + $0x38] sm:$0xff]
    %v43 = vlaneseq
    %v44 = vand.u32 %v43, 127
    %45 = vset.pattern.permute.xlu0 0
    %46 = vperm.xlu0 %45, %v35
    %v47 = vpop.permute.xlu0 %46
    %48 = vset.pattern.permute.xlu0 0
    %49 = vperm.xlu0 %48, %v36
    %v50 = vpop.permute.xlu0 %49
    %51 = vset.pattern.permute.xlu0 0
    %52 = vperm.xlu0 %51, %v37
    %v53 = vpop.permute.xlu0 %52
    %54 = vset.pattern.permute.xlu0 0
    %55 = vperm.xlu0 %54, %v38
    %v56 = vpop.permute.xlu0 %55
    %57 = vset.pattern.permute.xlu0 0
    %58 = vperm.xlu0 %57, %v39
    %v59 = vpop.permute.xlu0 %58
    %60 = vset.pattern.permute.xlu0 0
    %61 = vperm.xlu0 %60, %v40
    %v62 = vpop.permute.xlu0 %61
    %63 = vset.pattern.permute.xlu0 0
    %64 = vperm.xlu0 %63, %v41
    %v65 = vpop.permute.xlu0 %64
    %66 = vset.pattern.permute.xlu0 0
    %67 = vperm.xlu0 %66, %v42
    %v68 = vpop.permute.xlu0 %67
    %vm69 = vcmp.eq.s32.totalorder %v44, %v47
    %vm70 = vcmp.eq.s32.totalorder %v44, %v50
    %vm71 = vcmp.eq.s32.totalorder %v44, %v53
    %vm72 = vcmp.eq.s32.totalorder %v44, %v56
    %vm73 = vcmp.eq.s32.totalorder %v44, %v59
    %vm74 = vcmp.eq.s32.totalorder %v44, %v62
    %vm75 = vcmp.eq.s32.totalorder %v44, %v65
    %vm76 = vcmp.eq.s32.totalorder %v44, %v68
    %v77 = vsel %vm69, 1, 0
    %v78 = vsel %vm70, 1, 0
    %v79 = vsel %vm71, 1, 0
    %v80 = vsel %vm72, 1, 0
    %v81 = vsel %vm73, 1, 0
    %v82 = vsel %vm74, 1, 0
    %v83 = vsel %vm75, 1, 0
    %v84 = vsel %vm76, 1, 0
    %v85 = vcvt.s32.f32 %v77
    %v86 = vcvt.s32.f32 %v78
    %v87 = vcvt.s32.f32 %v79
    %v88 = vcvt.s32.f32 %v80
    %v89 = vcvt.s32.f32 %v81
    %v90 = vcvt.s32.f32 %v82
    %v91 = vcvt.s32.f32 %v83
    %v92 = vcvt.s32.f32 %v84
    %v93 = vld [vmem:[#allocation2] sm:$0xff]
    %v94 = vld [vmem:[#allocation2 + $0x8] sm:$0xff]
    %v95 = vld [vmem:[#allocation2 + $0x10] sm:$0xff]
    %v96 = vld [vmem:[#allocation2 + $0x18] sm:$0xff]
    %v97 = vld [vmem:[#allocation2 + $0x20] sm:$0xff]
    %v98 = vld [vmem:[#allocation2 + $0x28] sm:$0xff]
    %v99 = vld [vmem:[#allocation2 + $0x30] sm:$0xff]
    %v100 = vld [vmem:[#allocation2 + $0x38] sm:$0xff]
    %v101 = vld [vmem:[#allocation2 + $0x40] sm:$0xff]
    %v102 = vld [vmem:[#allocation2 + $0x48] sm:$0xff]
    %v103 = vld [vmem:[#allocation2 + $0x50] sm:$0xff]
    %v104 = vld [vmem:[#allocation2 + $0x58] sm:$0xff]
    %v105 = vld [vmem:[#allocation2 + $0x60] sm:$0xff]
    %v106 = vld [vmem:[#allocation2 + $0x68] sm:$0xff]
    %v107 = vld [vmem:[#allocation2 + $0x70] sm:$0xff]
    %v108 = vld [vmem:[#allocation2 + $0x78] sm:$0xff]
    %109 = vmatprep.subr.mxu0 0.0
    %110 = vmatpush1.msra.mxu0 %v93
    %111 = vmatprep.subr.mxu0 0.0
    %112 = vmatpush1.msra.mxu0 %v94
    %113 = vmatprep.subr.mxu0 0.0
    %114 = vmatpush1.msra.mxu0 %v95
    %115 = vmatprep.subr.mxu0 0.0
    %116 = vmatpush1.msra.mxu0 %v96
    %117 = vmatprep.subr.mxu0 0.0
    %118 = vmatpush1.msra.mxu0 %v97
    %119 = vmatprep.subr.mxu0 0.0
    %120 = vmatpush1.msra.mxu0 %v98
    %121 = vmatprep.subr.mxu0 0.0
    %122 = vmatpush1.msra.mxu0 %v99
    %123 = vmatprep.subr.mxu0 0.0
    %124 = vmatpush1.msra.mxu0 %v100
    %125 = vmatprep.subr.mxu0 0.0
    %126 = vmatpush1.msra.mxu0 %v101
    %127 = vmatprep.subr.mxu0 0.0
    %128 = vmatpush1.msra.mxu0 %v102
    %129 = vmatprep.subr.mxu0 0.0
    %130 = vmatpush1.msra.mxu0 %v103
    %131 = vmatprep.subr.mxu0 0.0
    %132 = vmatpush1.msra.mxu0 %v104
    %133 = vmatprep.subr.mxu0 0.0
    %134 = vmatpush1.msra.mxu0 %v105
    %135 = vmatprep.subr.mxu0 0.0
    %136 = vmatpush1.msra.mxu0 %v106
    %137 = vmatprep.subr.mxu0 0.0
    %138 = vmatpush1.msra.mxu0 %v107
    %139 = vmatprep.subr.mxu0 0.0
    %140 = vmatpush1.msra.mxu0 %v108
    %141 = vmatprep.subr.mxu0 0.0
    %142 = vmatpush1.msra.mxu0 0.0
    %143 = vmatprep.subr.mxu0 0.0
    %144 = vmatpush1.msra.mxu0 0.0
    %145 = vmatprep.subr.mxu0 0.0
    %146 = vmatpush1.msra.mxu0 0.0
    %147 = vmatprep.subr.mxu0 0.0
    %148 = vmatpush1.msra.mxu0 0.0
    %149 = vmatprep.subr.mxu0 0.0
    %150 = vmatpush1.msra.mxu0 0.0
    %151 = vmatprep.subr.mxu0 0.0
    %152 = vmatpush1.msra.mxu0 0.0
    %153 = vmatprep.subr.mxu0 0.0
    %154 = vmatpush1.msra.mxu0 0.0
    %155 = vmatprep.subr.mxu0 0.0
    %156 = vmatpush1.msra.mxu0 0.0
    %157 = vmatprep.subr.mxu0 0.0
    %158 = vmatpush1.msra.mxu0 0.0
    %159 = vmatprep.subr.mxu0 0.0
    %160 = vmatpush1.msra.mxu0 0.0
    %161 = vmatprep.subr.mxu0 0.0
    %162 = vmatpush1.msra.mxu0 0.0
    %163 = vmatprep.subr.mxu0 0.0
    %164 = vmatpush1.msra.mxu0 0.0
    %165 = vmatprep.subr.mxu0 0.0
    %166 = vmatpush1.msra.mxu0 0.0
    %167 = vmatprep.subr.mxu0 0.0
    %168 = vmatpush1.msra.mxu0 0.0
    %169 = vmatprep.subr.mxu0 0.0
    %170 = vmatpush1.msra.mxu0 0.0
    %171 = vmatprep.subr.mxu0 0.0
    %172 = vmatpush1.msra.mxu0 0.0
    %173 = vmatprep.mubr.f32.mxu0 0.0
    %174 = vmatmul.mubr.f32.gmra.mrb[0].mxu0 %v85
    %v175 = vpop.f32.mrb[0].mxu0
    %v176 = vadd.f32 0.0, %v175
    %v177 = vpop.f32.mrb[0].mxu0
    %178 = vmatprep.mubr.f32.mxu0 0.0
    %179 = vmatmul.mubr.f32.gmra.mrb[0].mxu0 %v86
    %v180 = vpop.f32.mrb[0].mxu0
    %v181 = vadd.f32 0.0, %v180
    %v182 = vpop.f32.mrb[0].mxu0
    %183 = vmatprep.mubr.f32.mxu0 0.0
    %184 = vmatmul.mubr.f32.gmra.mrb[0].mxu0 %v87
    %v185 = vpop.f32.mrb[0].mxu0
    %v186 = vadd.f32 0.0, %v185
    %v187 = vpop.f32.mrb[0].mxu0
    %188 = vmatprep.mubr.f32.mxu0 0.0
    %189 = vmatmul.mubr.f32.gmra.mrb[0].mxu0 %v88
    %v190 = vpop.f32.mrb[0].mxu0
    %v191 = vadd.f32 0.0, %v190
    %v192 = vpop.f32.mrb[0].mxu0
    %193 = vmatprep.mubr.f32.mxu0 0.0
    %194 = vmatmul.mubr.f32.gmra.mrb[0].mxu0 %v89
    %v195 = vpop.f32.mrb[0].mxu0
    %v196 = vadd.f32 0.0, %v195
    %v197 = vpop.f32.mrb[0].mxu0
    %198 = vmatprep.mubr.f32.mxu0 0.0
    %199 = vmatmul.mubr.f32.gmra.mrb[0].mxu0 %v90
    %v200 = vpop.f32.mrb[0].mxu0
    %v201 = vadd.f32 0.0, %v200
    %v202 = vpop.f32.mrb[0].mxu0
    %203 = vmatprep.mubr.f32.mxu0 0.0
    %204 = vmatmul.mubr.f32.gmra.mrb[0].mxu0 %v91
    %v205 = vpop.f32.mrb[0].mxu0
    %v206 = vadd.f32 0.0, %v205
    %v207 = vpop.f32.mrb[0].mxu0
    %208 = vmatprep.mubr.f32.mxu0 0.0
    %209 = vmatmul.mubr.f32.gmra.mrb[0].mxu0 %v92
    %v210 = vpop.f32.mrb[0].mxu0
    %v211 = vadd.f32 0.0, %v210
    %v212 = vpop.f32.mrb[0].mxu0
    %213 = vdwg.mxu0
    %v214 = vld [vmem:[%s2] sm:$0xff]
    %v215 = vld [vmem:[%s2 + $0x8] sm:$0xff]
    %v216 = vld [vmem:[%s2 + $0x10] sm:$0xff]
    %v217 = vld [vmem:[%s2 + $0x18] sm:$0xff]
    %vm218 = vcmask 261120
    %v220 = vsel %vm218, 0.0, 0
    %222 = vmatprep.subr.mxu0 0.0
    %223 = vmatpush1.msra.mxu0 %v214
    %224 = vmatprep.subr.mxu0 0.0
    %225 = vmatpush1.msra.mxu0 %v215
    %226 = vmatprep.subr.mxu0 0.0
    %227 = vmatpush1.msra.mxu0 %v216
    %228 = vmatprep.subr.mxu0 0.0
    %229 = vmatpush1.msra.mxu0 %v217
    %230 = vmatprep.subr.mxu0 0.0
    %231 = vmatpush1.msra.mxu0 0.0
    %232 = vmatprep.subr.mxu0 0.0
    %233 = vmatpush1.msra.mxu0 0.0
    %234 = vmatprep.subr.mxu0 0.0
    %235 = vmatpush1.msra.mxu0 0.0
    %236 = vmatprep.subr.mxu0 0.0
    %237 = vmatpush1.msra.mxu0 0.0
    %238 = vmatprep.subr.mxu0 0.0
    %239 = vmatpush1.msra.mxu0 0.0
    %240 = vmatprep.subr.mxu0 0.0
    %241 = vmatpush1.msra.mxu0 0.0
    %242 = vmatprep.subr.mxu0 0.0
    %243 = vmatpush1.msra.mxu0 0.0
    %244 = vmatprep.subr.mxu0 0.0
    %245 = vmatpush1.msra.mxu0 0.0
    %246 = vmatprep.subr.mxu0 0.0
    %247 = vmatpush1.msra.mxu0 0.0
    %248 = vmatprep.subr.mxu0 0.0
    %249 = vmatpush1.msra.mxu0 0.0
    %250 = vmatprep.subr.mxu0 0.0
    %251 = vmatpush1.msra.mxu0 0.0
    %252 = vmatprep.subr.mxu0 0.0
    %253 = vmatpush1.msra.mxu0 0.0
    %254 = vmatprep.subr.mxu0 0.0
    %255 = vmatpush1.msra.mxu0 0.0
    %256 = vmatprep.subr.mxu0 0.0
    %257 = vmatpush1.msra.mxu0 0.0
    %258 = vmatprep.subr.mxu0 0.0
    %259 = vmatpush1.msra.mxu0 0.0
    %260 = vmatprep.subr.mxu0 0.0
    %261 = vmatpush1.msra.mxu0 0.0
    %262 = vmatprep.subr.mxu0 0.0
    %263 = vmatpush1.msra.mxu0 0.0
    %264 = vmatprep.subr.mxu0 0.0
    %265 = vmatpush1.msra.mxu0 0.0
    %266 = vmatprep.subr.mxu0 0.0
    %267 = vmatpush1.msra.mxu0 0.0
    %268 = vmatprep.subr.mxu0 0.0
    %269 = vmatpush1.msra.mxu0 0.0
    %270 = vmatprep.subr.mxu0 0.0
    %271 = vmatpush1.msra.mxu0 0.0
    %272 = vmatprep.subr.mxu0 0.0
    %273 = vmatpush1.msra.mxu0 0.0
    %274 = vmatprep.subr.mxu0 0.0
    %275 = vmatpush1.msra.mxu0 0.0
    %276 = vmatprep.subr.mxu0 0.0
    %277 = vmatpush1.msra.mxu0 0.0
    %278 = vmatprep.subr.mxu0 0.0
    %279 = vmatpush1.msra.mxu0 0.0
    %280 = vmatprep.subr.mxu0 0.0
    %281 = vmatpush1.msra.mxu0 0.0
    %282 = vmatprep.subr.mxu0 0.0
    %283 = vmatpush1.msra.mxu0 0.0
    %284 = vmatprep.subr.mxu0 0.0
    %285 = vmatpush1.msra.mxu0 0.0
    %286 = vmatprep.mubr.f32.mxu0 0.0
    %287 = vmatmul.mubr.f32.gmra.mrb[0].mxu0 %v220
    %v288 = vpop.f32.mrb[0].mxu0
    %v289 = vadd.f32 0.0, %v288
    %v290 = vpop.f32.mrb[0].mxu0
    %291 = vdwg.mxu0
    %v292 = vadd.f32 %v176, %v289
    %v293 = vxor.u32 %v292, 2147483648
    %v294 = vmul.f32 %v293, 1.442695
    %v295 = vpow.pop %v294
    %v296 = vadd.f32 %v295, 1.0
    %v297 = vrcp.pop %v296
    %v298 = vmul.f32 1.0, %v297
    %v299 = vtanh.pop %v292
    %v300 = vmul.f32 %v298, 0.0
    %302 = vrot.lane.b32.xlu0 %v299, 32
    %v303 = vpop.permute.xlu0 %302
    %v305 = vmul.f32 %v298, %v303
    %307 = vrot.lane.b32.xlu0 %v305, 32
    %v308 = vpop.permute.xlu0 %307
    %v310 = vadd.f32 %v300, %v308
    %v311 = vtanh.pop %v310
    %313 = vrot.lane.b32.xlu0 %v311, 32
    %v314 = vpop.permute.xlu0 %313
    %v316 = vmul.f32 %v298, %v314
    %318 = vrot.lane.b32.xlu0 %v316, 64
    %v319 = vpop.permute.xlu0 %318
    %v320 = vsel %vm218, %v319, 0
    %322 = vmatprep.subr.mxu0 0.0
    %323 = vmatpush1.msra.mxu0 %v214
    %324 = vmatprep.subr.mxu0 0.0
    %325 = vmatpush1.msra.mxu0 %v215
    %326 = vmatprep.subr.mxu0 0.0
    %327 = vmatpush1.msra.mxu0 %v216
    %328 = vmatprep.subr.mxu0 0.0
    %329 = vmatpush1.msra.mxu0 %v217
    %330 = vmatprep.subr.mxu0 0.0
    %331 = vmatpush1.msra.mxu0 0.0
    %332 = vmatprep.subr.mxu0 0.0
    %333 = vmatpush1.msra.mxu0 0.0
    %334 = vmatprep.subr.mxu0 0.0
    %335 = vmatpush1.msra.mxu0 0.0
    %336 = vmatprep.subr.mxu0 0.0
    %337 = vmatpush1.msra.mxu0 0.0
    %338 = vmatprep.subr.mxu0 0.0
    %339 = vmatpush1.msra.mxu0 0.0
    %340 = vmatprep.subr.mxu0 0.0
    %341 = vmatpush1.msra.mxu0 0.0
    %342 = vmatprep.subr.mxu0 0.0
    %343 = vmatpush1.msra.mxu0 0.0
    %344 = vmatprep.subr.mxu0 0.0
    %345 = vmatpush1.msra.mxu0 0.0
    %346 = vmatprep.subr.mxu0 0.0
    %347 = vmatpush1.msra.mxu0 0.0
    %348 = vmatprep.subr.mxu0 0.0
    %349 = vmatpush1.msra.mxu0 0.0
    %350 = vmatprep.subr.mxu0 0.0
    %351 = vmatpush1.msra.mxu0 0.0
    %352 = vmatprep.subr.mxu0 0.0
    %353 = vmatpush1.msra.mxu0 0.0
    %354 = vmatprep.subr.mxu0 0.0
    %355 = vmatpush1.msra.mxu0 0.0
    %356 = vmatprep.subr.mxu0 0.0
    %357 = vmatpush1.msra.mxu0 0.0
    %358 = vmatprep.subr.mxu0 0.0
    %359 = vmatpush1.msra.mxu0 0.0
    %360 = vmatprep.subr.mxu0 0.0
    %361 = vmatpush1.msra.mxu0 0.0
    %362 = vmatprep.subr.mxu0 0.0
    %363 = vmatpush1.msra.mxu0 0.0
    %364 = vmatprep.subr.mxu0 0.0
    %365 = vmatpush1.msra.mxu0 0.0
    %366 = vmatprep.subr.mxu0 0.0
    %367 = vmatpush1.msra.mxu0 0.0
    %368 = vmatprep.subr.mxu0 0.0
    %369 = vmatpush1.msra.mxu0 0.0
    %370 = vmatprep.subr.mxu0 0.0
    %371 = vmatpush1.msra.mxu0 0.0
    %372 = vmatprep.subr.mxu0 0.0
    %373 = vmatpush1.msra.mxu0 0.0
    %374 = vmatprep.subr.mxu0 0.0
    %375 = vmatpush1.msra.mxu0 0.0
    %376 = vmatprep.subr.mxu0 0.0
    %377 = vmatpush1.msra.mxu0 0.0
    %378 = vmatprep.subr.mxu0 0.0
    %379 = vmatpush1.msra.mxu0 0.0
    %380 = vmatprep.subr.mxu0 0.0
    %381 = vmatpush1.msra.mxu0 0.0
    %382 = vmatprep.subr.mxu0 0.0
    %383 = vmatpush1.msra.mxu0 0.0
    %384 = vmatprep.subr.mxu0 0.0
    %385 = vmatpush1.msra.mxu0 0.0
    %386 = vmatprep.mubr.f32.mxu0 0.0
    %387 = vmatmul.mubr.f32.gmra.mrb[0].mxu0 %v320
    %v388 = vpop.f32.mrb[0].mxu0
    %v389 = vadd.f32 0.0, %v388
    %v390 = vpop.f32.mrb[0].mxu0
    %391 = vdwg.mxu0
    %v392 = vadd.f32 %v181, %v389
    %v393 = vxor.u32 %v392, 2147483648
    %v394 = vmul.f32 %v393, 1.442695
    %v395 = vpow.pop %v394
    %v396 = vadd.f32 %v395, 1.0
    %v397 = vrcp.pop %v396
    %v398 = vmul.f32 1.0, %v397
    %v399 = vtanh.pop %v392
    %v400 = vmul.f32 %v398, %v310
    %402 = vrot.lane.b32.xlu0 %v399, 32
    %v403 = vpop.permute.xlu0 %402
    %v405 = vmul.f32 %v398, %v403
    %407 = vrot.lane.b32.xlu0 %v405, 32
    %v408 = vpop.permute.xlu0 %407
    %v410 = vadd.f32 %v400, %v408
    %v411 = vtanh.pop %v410
    %413 = vrot.lane.b32.xlu0 %v411, 32
    %v414 = vpop.permute.xlu0 %413
    %v416 = vmul.f32 %v398, %v414
    %418 = vrot.lane.b32.xlu0 %v416, 64
    %v419 = vpop.permute.xlu0 %418
    %v420 = vsel %vm218, %v419, 0
    %422 = vmatprep.subr.mxu0 0.0
    %423 = vmatpush1.msra.mxu0 %v214
    %424 = vmatprep.subr.mxu0 0.0
    %425 = vmatpush1.msra.mxu0 %v215
    %426 = vmatprep.subr.mxu0 0.0
    %427 = vmatpush1.msra.mxu0 %v216
    %428 = vmatprep.subr.mxu0 0.0
    %429 = vmatpush1.msra.mxu0 %v217
    %430 = vmatprep.subr.mxu0 0.0
    %431 = vmatpush1.msra.mxu0 0.0
    %432 = vmatprep.subr.mxu0 0.0
    %433 = vmatpush1.msra.mxu0 0.0
    %434 = vmatprep.subr.mxu0 0.0
    %435 = vmatpush1.msra.mxu0 0.0
    %436 = vmatprep.subr.mxu0 0.0
    %437 = vmatpush1.msra.mxu0 0.0
    %438 = vmatprep.subr.mxu0 0.0
    %439 = vmatpush1.msra.mxu0 0.0
    %440 = vmatprep.subr.mxu0 0.0
    %441 = vmatpush1.msra.mxu0 0.0
    %442 = vmatprep.subr.mxu0 0.0
    %443 = vmatpush1.msra.mxu0 0.0
    %444 = vmatprep.subr.mxu0 0.0
    %445 = vmatpush1.msra.mxu0 0.0
    %446 = vmatprep.subr.mxu0 0.0
    %447 = vmatpush1.msra.mxu0 0.0
    %448 = vmatprep.subr.mxu0 0.0
    %449 = vmatpush1.msra.mxu0 0.0
    %450 = vmatprep.subr.mxu0 0.0
    %451 = vmatpush1.msra.mxu0 0.0
    %452 = vmatprep.subr.mxu0 0.0
    %453 = vmatpush1.msra.mxu0 0.0
    %454 = vmatprep.subr.mxu0 0.0
    %455 = vmatpush1.msra.mxu0 0.0
    %456 = vmatprep.subr.mxu0 0.0
    %457 = vmatpush1.msra.mxu0 0.0
    %458 = vmatprep.subr.mxu0 0.0
    %459 = vmatpush1.msra.mxu0 0.0
    %460 = vmatprep.subr.mxu0 0.0
    %461 = vmatpush1.msra.mxu0 0.0
    %462 = vmatprep.subr.mxu0 0.0
    %463 = vmatpush1.msra.mxu0 0.0
    %464 = vmatprep.subr.mxu0 0.0
    %465 = vmatpush1.msra.mxu0 0.0
    %466 = vmatprep.subr.mxu0 0.0
    %467 = vmatpush1.msra.mxu0 0.0
    %468 = vmatprep.subr.mxu0 0.0
    %469 = vmatpush1.msra.mxu0 0.0
    %470 = vmatprep.subr.mxu0 0.0
    %471 = vmatpush1.msra.mxu0 0.0
    %472 = vmatprep.subr.mxu0 0.0
    %473 = vmatpush1.msra.mxu0 0.0
    %474 = vmatprep.subr.mxu0 0.0
    %475 = vmatpush1.msra.mxu0 0.0
    %476 = vmatprep.subr.mxu0 0.0
    %477 = vmatpush1.msra.mxu0 0.0
    %478 = vmatprep.subr.mxu0 0.0
    %479 = vmatpush1.msra.mxu0 0.0
    %480 = vmatprep.subr.mxu0 0.0
    %481 = vmatpush1.msra.mxu0 0.0
    %482 = vmatprep.subr.mxu0 0.0
    %483 = vmatpush1.msra.mxu0 0.0
    %484 = vmatprep.subr.mxu0 0.0
    %485 = vmatpush1.msra.mxu0 0.0
    %486 = vmatprep.mubr.f32.mxu0 0.0
    %487 = vmatmul.mubr.f32.gmra.mrb[0].mxu0 %v420
    %v488 = vpop.f32.mrb[0].mxu0
    %v489 = vadd.f32 0.0, %v488
    %v490 = vpop.f32.mrb[0].mxu0
    %491 = vdwg.mxu0
    %v492 = vadd.f32 %v186, %v489
    %v493 = vxor.u32 %v492, 2147483648
    %v494 = vmul.f32 %v493, 1.442695
    %v495 = vpow.pop %v494
    %v496 = vadd.f32 %v495, 1.0
    %v497 = vrcp.pop %v496
    %v498 = vmul.f32 1.0, %v497
    %v499 = vtanh.pop %v492
    %v500 = vmul.f32 %v498, %v410
    %502 = vrot.lane.b32.xlu0 %v499, 32
    %v503 = vpop.permute.xlu0 %502
    %v505 = vmul.f32 %v498, %v503
    %507 = vrot.lane.b32.xlu0 %v505, 32
    %v508 = vpop.permute.xlu0 %507
    %v510 = vadd.f32 %v500, %v508
    %v511 = vtanh.pop %v510
    %513 = vrot.lane.b32.xlu0 %v511, 32
    %v514 = vpop.permute.xlu0 %513
    %v516 = vmul.f32 %v498, %v514
    %518 = vrot.lane.b32.xlu0 %v516, 64
    %v519 = vpop.permute.xlu0 %518
    %v520 = vsel %vm218, %v519, 0
    %522 = vmatprep.subr.mxu0 0.0
    %523 = vmatpush1.msra.mxu0 %v214
    %524 = vmatprep.subr.mxu0 0.0
    %525 = vmatpush1.msra.mxu0 %v215
    %526 = vmatprep.subr.mxu0 0.0
    %527 = vmatpush1.msra.mxu0 %v216
    %528 = vmatprep.subr.mxu0 0.0
    %529 = vmatpush1.msra.mxu0 %v217
    %530 = vmatprep.subr.mxu0 0.0
    %531 = vmatpush1.msra.mxu0 0.0
    %532 = vmatprep.subr.mxu0 0.0
    %533 = vmatpush1.msra.mxu0 0.0
    %534 = vmatprep.subr.mxu0 0.0
    %535 = vmatpush1.msra.mxu0 0.0
    %536 = vmatprep.subr.mxu0 0.0
    %537 = vmatpush1.msra.mxu0 0.0
    %538 = vmatprep.subr.mxu0 0.0
    %539 = vmatpush1.msra.mxu0 0.0
    %540 = vmatprep.subr.mxu0 0.0
    %541 = vmatpush1.msra.mxu0 0.0
    %542 = vmatprep.subr.mxu0 0.0
    %543 = vmatpush1.msra.mxu0 0.0
    %544 = vmatprep.subr.mxu0 0.0
    %545 = vmatpush1.msra.mxu0 0.0
    %546 = vmatprep.subr.mxu0 0.0
    %547 = vmatpush1.msra.mxu0 0.0
    %548 = vmatprep.subr.mxu0 0.0
    %549 = vmatpush1.msra.mxu0 0.0
    %550 = vmatprep.subr.mxu0 0.0
    %551 = vmatpush1.msra.mxu0 0.0
    %552 = vmatprep.subr.mxu0 0.0
    %553 = vmatpush1.msra.mxu0 0.0
    %554 = vmatprep.subr.mxu0 0.0
    %555 = vmatpush1.msra.mxu0 0.0
    %556 = vmatprep.subr.mxu0 0.0
    %557 = vmatpush1.msra.mxu0 0.0
    %558 = vmatprep.subr.mxu0 0.0
    %559 = vmatpush1.msra.mxu0 0.0
    %560 = vmatprep.subr.mxu0 0.0
    %561 = vmatpush1.msra.mxu0 0.0
    %562 = vmatprep.subr.mxu0 0.0
    %563 = vmatpush1.msra.mxu0 0.0
    %564 = vmatprep.subr.mxu0 0.0
    %565 = vmatpush1.msra.mxu0 0.0
    %566 = vmatprep.subr.mxu0 0.0
    %567 = vmatpush1.msra.mxu0 0.0
    %568 = vmatprep.subr.mxu0 0.0
    %569 = vmatpush1.msra.mxu0 0.0
    %570 = vmatprep.subr.mxu0 0.0
    %571 = vmatpush1.msra.mxu0 0.0
    %572 = vmatprep.subr.mxu0 0.0
    %573 = vmatpush1.msra.mxu0 0.0
    %574 = vmatprep.subr.mxu0 0.0
    %575 = vmatpush1.msra.mxu0 0.0
    %576 = vmatprep.subr.mxu0 0.0
    %577 = vmatpush1.msra.mxu0 0.0
    %578 = vmatprep.subr.mxu0 0.0
    %579 = vmatpush1.msra.mxu0 0.0
    %580 = vmatprep.subr.mxu0 0.0
    %581 = vmatpush1.msra.mxu0 0.0
    %582 = vmatprep.subr.mxu0 0.0
    %583 = vmatpush1.msra.mxu0 0.0
    %584 = vmatprep.subr.mxu0 0.0
    %585 = vmatpush1.msra.mxu0 0.0
    %586 = vmatprep.mubr.f32.mxu0 0.0
    %587 = vmatmul.mubr.f32.gmra.mrb[0].mxu0 %v520
    %v588 = vpop.f32.mrb[0].mxu0
    %v589 = vadd.f32 0.0, %v588
    %v590 = vpop.f32.mrb[0].mxu0
    %591 = vdwg.mxu0
    %v592 = vadd.f32 %v191, %v589
    %v593 = vxor.u32 %v592, 2147483648
    %v594 = vmul.f32 %v593, 1.442695
    %v595 = vpow.pop %v594
    %v596 = vadd.f32 %v595, 1.0
    %v597 = vrcp.pop %v596
    %v598 = vmul.f32 1.0, %v597
    %v599 = vtanh.pop %v592
    %v600 = vmul.f32 %v598, %v510
    %602 = vrot.lane.b32.xlu0 %v599, 32
    %v603 = vpop.permute.xlu0 %602
    %v605 = vmul.f32 %v598, %v603
    %607 = vrot.lane.b32.xlu0 %v605, 32
    %v608 = vpop.permute.xlu0 %607
    %v610 = vadd.f32 %v600, %v608
    %v611 = vtanh.pop %v610
    %613 = vrot.lane.b32.xlu0 %v611, 32
    %v614 = vpop.permute.xlu0 %613
    %v616 = vmul.f32 %v598, %v614
    %618 = vrot.lane.b32.xlu0 %v616, 64
    %v619 = vpop.permute.xlu0 %618
    %v620 = vsel %vm218, %v619, 0
    %622 = vmatprep.subr.mxu0 0.0
    %623 = vmatpush1.msra.mxu0 %v214
    %624 = vmatprep.subr.mxu0 0.0
    %625 = vmatpush1.msra.mxu0 %v215
    %626 = vmatprep.subr.mxu0 0.0
    %627 = vmatpush1.msra.mxu0 %v216
    %628 = vmatprep.subr.mxu0 0.0
    %629 = vmatpush1.msra.mxu0 %v217
    %630 = vmatprep.subr.mxu0 0.0
    %631 = vmatpush1.msra.mxu0 0.0
    %632 = vmatprep.subr.mxu0 0.0
    %633 = vmatpush1.msra.mxu0 0.0
    %634 = vmatprep.subr.mxu0 0.0
    %635 = vmatpush1.msra.mxu0 0.0
    %636 = vmatprep.subr.mxu0 0.0
    %637 = vmatpush1.msra.mxu0 0.0
    %638 = vmatprep.subr.mxu0 0.0
    %639 = vmatpush1.msra.mxu0 0.0
    %640 = vmatprep.subr.mxu0 0.0
    %641 = vmatpush1.msra.mxu0 0.0
    %642 = vmatprep.subr.mxu0 0.0
    %643 = vmatpush1.msra.mxu0 0.0
    %644 = vmatprep.subr.mxu0 0.0
    %645 = vmatpush1.msra.mxu0 0.0
    %646 = vmatprep.subr.mxu0 0.0
    %647 = vmatpush1.msra.mxu0 0.0
    %648 = vmatprep.subr.mxu0 0.0
    %649 = vmatpush1.msra.mxu0 0.0
    %650 = vmatprep.subr.mxu0 0.0
    %651 = vmatpush1.msra.mxu0 0.0
    %652 = vmatprep.subr.mxu0 0.0
    %653 = vmatpush1.msra.mxu0 0.0
    %654 = vmatprep.subr.mxu0 0.0
    %655 = vmatpush1.msra.mxu0 0.0
    %656 = vmatprep.subr.mxu0 0.0
    %657 = vmatpush1.msra.mxu0 0.0
    %658 = vmatprep.subr.mxu0 0.0
    %659 = vmatpush1.msra.mxu0 0.0
    %660 = vmatprep.subr.mxu0 0.0
    %661 = vmatpush1.msra.mxu0 0.0
    %662 = vmatprep.subr.mxu0 0.0
    %663 = vmatpush1.msra.mxu0 0.0
    %664 = vmatprep.subr.mxu0 0.0
    %665 = vmatpush1.msra.mxu0 0.0
    %666 = vmatprep.subr.mxu0 0.0
    %667 = vmatpush1.msra.mxu0 0.0
    %668 = vmatprep.subr.mxu0 0.0
    %669 = vmatpush1.msra.mxu0 0.0
    %670 = vmatprep.subr.mxu0 0.0
    %671 = vmatpush1.msra.mxu0 0.0
    %672 = vmatprep.subr.mxu0 0.0
    %673 = vmatpush1.msra.mxu0 0.0
    %674 = vmatprep.subr.mxu0 0.0
    %675 = vmatpush1.msra.mxu0 0.0
    %676 = vmatprep.subr.mxu0 0.0
    %677 = vmatpush1.msra.mxu0 0.0
    %678 = vmatprep.subr.mxu0 0.0
    %679 = vmatpush1.msra.mxu0 0.0
    %680 = vmatprep.subr.mxu0 0.0
    %681 = vmatpush1.msra.mxu0 0.0
    %682 = vmatprep.subr.mxu0 0.0
    %683 = vmatpush1.msra.mxu0 0.0
    %684 = vmatprep.subr.mxu0 0.0
    %685 = vmatpush1.msra.mxu0 0.0
    %686 = vmatprep.mubr.f32.mxu0 0.0
    %687 = vmatmul.mubr.f32.gmra.mrb[0].mxu0 %v620
    %v688 = vpop.f32.mrb[0].mxu0
    %v689 = vadd.f32 0.0, %v688
    %v690 = vpop.f32.mrb[0].mxu0
    %691 = vdwg.mxu0
    %v692 = vadd.f32 %v196, %v689
    %v693 = vxor.u32 %v692, 2147483648
    %v694 = vmul.f32 %v693, 1.442695
    %v695 = vpow.pop %v694
    %v696 = vadd.f32 %v695, 1.0
    %v697 = vrcp.pop %v696
    %v698 = vmul.f32 1.0, %v697
    %v699 = vtanh.pop %v692
    %v700 = vmul.f32 %v698, %v610
    %702 = vrot.lane.b32.xlu0 %v699, 32
    %v703 = vpop.permute.xlu0 %702
    %v705 = vmul.f32 %v698, %v703
    %707 = vrot.lane.b32.xlu0 %v705, 32
    %v708 = vpop.permute.xlu0 %707
    %v710 = vadd.f32 %v700, %v708
    %v711 = vtanh.pop %v710
    %713 = vrot.lane.b32.xlu0 %v711, 32
    %v714 = vpop.permute.xlu0 %713
    %v716 = vmul.f32 %v698, %v714
    %718 = vrot.lane.b32.xlu0 %v716, 64
    %v719 = vpop.permute.xlu0 %718
    %v720 = vsel %vm218, %v719, 0
    %722 = vmatprep.subr.mxu0 0.0
    %723 = vmatpush1.msra.mxu0 %v214
    %724 = vmatprep.subr.mxu0 0.0
    %725 = vmatpush1.msra.mxu0 %v215
    %726 = vmatprep.subr.mxu0 0.0
    %727 = vmatpush1.msra.mxu0 %v216
    %728 = vmatprep.subr.mxu0 0.0
    %729 = vmatpush1.msra.mxu0 %v217
    %730 = vmatprep.subr.mxu0 0.0
    %731 = vmatpush1.msra.mxu0 0.0
    %732 = vmatprep.subr.mxu0 0.0
    %733 = vmatpush1.msra.mxu0 0.0
    %734 = vmatprep.subr.mxu0 0.0
    %735 = vmatpush1.msra.mxu0 0.0
    %736 = vmatprep.subr.mxu0 0.0
    %737 = vmatpush1.msra.mxu0 0.0
    %738 = vmatprep.subr.mxu0 0.0
    %739 = vmatpush1.msra.mxu0 0.0
    %740 = vmatprep.subr.mxu0 0.0
    %741 = vmatpush1.msra.mxu0 0.0
    %742 = vmatprep.subr.mxu0 0.0
    %743 = vmatpush1.msra.mxu0 0.0
    %744 = vmatprep.subr.mxu0 0.0
    %745 = vmatpush1.msra.mxu0 0.0
    %746 = vmatprep.subr.mxu0 0.0
    %747 = vmatpush1.msra.mxu0 0.0
    %748 = vmatprep.subr.mxu0 0.0
    %749 = vmatpush1.msra.mxu0 0.0
    %750 = vmatprep.subr.mxu0 0.0
    %751 = vmatpush1.msra.mxu0 0.0
    %752 = vmatprep.subr.mxu0 0.0
    %753 = vmatpush1.msra.mxu0 0.0
    %754 = vmatprep.subr.mxu0 0.0
    %755 = vmatpush1.msra.mxu0 0.0
    %756 = vmatprep.subr.mxu0 0.0
    %757 = vmatpush1.msra.mxu0 0.0
    %758 = vmatprep.subr.mxu0 0.0
    %759 = vmatpush1.msra.mxu0 0.0
    %760 = vmatprep.subr.mxu0 0.0
    %761 = vmatpush1.msra.mxu0 0.0
    %762 = vmatprep.subr.mxu0 0.0
    %763 = vmatpush1.msra.mxu0 0.0
    %764 = vmatprep.subr.mxu0 0.0
    %765 = vmatpush1.msra.mxu0 0.0
    %766 = vmatprep.subr.mxu0 0.0
    %767 = vmatpush1.msra.mxu0 0.0
    %768 = vmatprep.subr.mxu0 0.0
    %769 = vmatpush1.msra.mxu0 0.0
    %770 = vmatprep.subr.mxu0 0.0
    %771 = vmatpush1.msra.mxu0 0.0
    %772 = vmatprep.subr.mxu0 0.0
    %773 = vmatpush1.msra.mxu0 0.0
    %774 = vmatprep.subr.mxu0 0.0
    %775 = vmatpush1.msra.mxu0 0.0
    %776 = vmatprep.subr.mxu0 0.0
    %777 = vmatpush1.msra.mxu0 0.0
    %778 = vmatprep.subr.mxu0 0.0
    %779 = vmatpush1.msra.mxu0 0.0
    %780 = vmatprep.subr.mxu0 0.0
    %781 = vmatpush1.msra.mxu0 0.0
    %782 = vmatprep.subr.mxu0 0.0
    %783 = vmatpush1.msra.mxu0 0.0
    %784 = vmatprep.subr.mxu0 0.0
    %785 = vmatpush1.msra.mxu0 0.0
    %786 = vmatprep.mubr.f32.mxu0 0.0
    %787 = vmatmul.mubr.f32.gmra.mrb[0].mxu0 %v720
    %v788 = vpop.f32.mrb[0].mxu0
    %v789 = vadd.f32 0.0, %v788
    %v790 = vpop.f32.mrb[0].mxu0
    %791 = vdwg.mxu0
    %v792 = vadd.f32 %v201, %v789
    %v793 = vxor.u32 %v792, 2147483648
    %v794 = vmul.f32 %v793, 1.442695
    %v795 = vpow.pop %v794
    %v796 = vadd.f32 %v795, 1.0
    %v797 = vrcp.pop %v796
    %v798 = vmul.f32 1.0, %v797
    %v799 = vtanh.pop %v792
    %v800 = vmul.f32 %v798, %v710
    %802 = vrot.lane.b32.xlu0 %v799, 32
    %v803 = vpop.permute.xlu0 %802
    %v805 = vmul.f32 %v798, %v803
    %807 = vrot.lane.b32.xlu0 %v805, 32
    %v808 = vpop.permute.xlu0 %807
    %v810 = vadd.f32 %v800, %v808
    %v811 = vtanh.pop %v810
    %813 = vrot.lane.b32.xlu0 %v811, 32
    %v814 = vpop.permute.xlu0 %813
    %v816 = vmul.f32 %v798, %v814
    %818 = vrot.lane.b32.xlu0 %v816, 64
    %v819 = vpop.permute.xlu0 %818
    %v820 = vsel %vm218, %v819, 0
    %822 = vmatprep.subr.mxu0 0.0
    %823 = vmatpush1.msra.mxu0 %v214
    %824 = vmatprep.subr.mxu0 0.0
    %825 = vmatpush1.msra.mxu0 %v215
    %826 = vmatprep.subr.mxu0 0.0
    %827 = vmatpush1.msra.mxu0 %v216
    %828 = vmatprep.subr.mxu0 0.0
    %829 = vmatpush1.msra.mxu0 %v217
    %830 = vmatprep.subr.mxu0 0.0
    %831 = vmatpush1.msra.mxu0 0.0
    %832 = vmatprep.subr.mxu0 0.0
    %833 = vmatpush1.msra.mxu0 0.0
    %834 = vmatprep.subr.mxu0 0.0
    %835 = vmatpush1.msra.mxu0 0.0
    %836 = vmatprep.subr.mxu0 0.0
    %837 = vmatpush1.msra.mxu0 0.0
    %838 = vmatprep.subr.mxu0 0.0
    %839 = vmatpush1.msra.mxu0 0.0
    %840 = vmatprep.subr.mxu0 0.0
    %841 = vmatpush1.msra.mxu0 0.0
    %842 = vmatprep.subr.mxu0 0.0
    %843 = vmatpush1.msra.mxu0 0.0
    %844 = vmatprep.subr.mxu0 0.0
    %845 = vmatpush1.msra.mxu0 0.0
    %846 = vmatprep.subr.mxu0 0.0
    %847 = vmatpush1.msra.mxu0 0.0
    %848 = vmatprep.subr.mxu0 0.0
    %849 = vmatpush1.msra.mxu0 0.0
    %850 = vmatprep.subr.mxu0 0.0
    %851 = vmatpush1.msra.mxu0 0.0
    %852 = vmatprep.subr.mxu0 0.0
    %853 = vmatpush1.msra.mxu0 0.0
    %854 = vmatprep.subr.mxu0 0.0
    %855 = vmatpush1.msra.mxu0 0.0
    %856 = vmatprep.subr.mxu0 0.0
    %857 = vmatpush1.msra.mxu0 0.0
    %858 = vmatprep.subr.mxu0 0.0
    %859 = vmatpush1.msra.mxu0 0.0
    %860 = vmatprep.subr.mxu0 0.0
    %861 = vmatpush1.msra.mxu0 0.0
    %862 = vmatprep.subr.mxu0 0.0
    %863 = vmatpush1.msra.mxu0 0.0
    %864 = vmatprep.subr.mxu0 0.0
    %865 = vmatpush1.msra.mxu0 0.0
    %866 = vmatprep.subr.mxu0 0.0
    %867 = vmatpush1.msra.mxu0 0.0
    %868 = vmatprep.subr.mxu0 0.0
    %869 = vmatpush1.msra.mxu0 0.0
    %870 = vmatprep.subr.mxu0 0.0
    %871 = vmatpush1.msra.mxu0 0.0
    %872 = vmatprep.subr.mxu0 0.0
    %873 = vmatpush1.msra.mxu0 0.0
    %874 = vmatprep.subr.mxu0 0.0
    %875 = vmatpush1.msra.mxu0 0.0
    %876 = vmatprep.subr.mxu0 0.0
    %877 = vmatpush1.msra.mxu0 0.0
    %878 = vmatprep.subr.mxu0 0.0
    %879 = vmatpush1.msra.mxu0 0.0
    %880 = vmatprep.subr.mxu0 0.0
    %881 = vmatpush1.msra.mxu0 0.0
    %882 = vmatprep.subr.mxu0 0.0
    %883 = vmatpush1.msra.mxu0 0.0
    %884 = vmatprep.subr.mxu0 0.0
    %885 = vmatpush1.msra.mxu0 0.0
    %886 = vmatprep.mubr.f32.mxu0 0.0
    %887 = vmatmul.mubr.f32.gmra.mrb[0].mxu0 %v820
    %v888 = vpop.f32.mrb[0].mxu0
    %v889 = vadd.f32 0.0, %v888
    %v890 = vpop.f32.mrb[0].mxu0
    %891 = vdwg.mxu0
    %v892 = vadd.f32 %v206, %v889
    %v893 = vxor.u32 %v892, 2147483648
    %v894 = vmul.f32 %v893, 1.442695
    %v895 = vpow.pop %v894
    %v896 = vadd.f32 %v895, 1.0
    %v897 = vrcp.pop %v896
    %v898 = vmul.f32 1.0, %v897
    %v899 = vtanh.pop %v892
    %v900 = vmul.f32 %v898, %v810
    %902 = vrot.lane.b32.xlu0 %v899, 32
    %v903 = vpop.permute.xlu0 %902
    %v905 = vmul.f32 %v898, %v903
    %907 = vrot.lane.b32.xlu0 %v905, 32
    %v908 = vpop.permute.xlu0 %907
    %v910 = vadd.f32 %v900, %v908
    %v911 = vtanh.pop %v910
    %913 = vrot.lane.b32.xlu0 %v911, 32
    %v914 = vpop.permute.xlu0 %913
    %v916 = vmul.f32 %v898, %v914
    %918 = vrot.lane.b32.xlu0 %v916, 64
    %v919 = vpop.permute.xlu0 %918
    %v920 = vsel %vm218, %v919, 0
    %922 = vmatprep.subr.mxu0 0.0
    %923 = vmatpush1.msra.mxu0 %v214
    %924 = vmatprep.subr.mxu0 0.0
    %925 = vmatpush1.msra.mxu0 %v215
    %926 = vmatprep.subr.mxu0 0.0
    %927 = vmatpush1.msra.mxu0 %v216
    %928 = vmatprep.subr.mxu0 0.0
    %929 = vmatpush1.msra.mxu0 %v217
    %930 = vmatprep.subr.mxu0 0.0
    %931 = vmatpush1.msra.mxu0 0.0
    %932 = vmatprep.subr.mxu0 0.0
    %933 = vmatpush1.msra.mxu0 0.0
    %934 = vmatprep.subr.mxu0 0.0
    %935 = vmatpush1.msra.mxu0 0.0
    %936 = vmatprep.subr.mxu0 0.0
    %937 = vmatpush1.msra.mxu0 0.0
    %938 = vmatprep.subr.mxu0 0.0
    %939 = vmatpush1.msra.mxu0 0.0
    %940 = vmatprep.subr.mxu0 0.0
    %941 = vmatpush1.msra.mxu0 0.0
    %942 = vmatprep.subr.mxu0 0.0
    %943 = vmatpush1.msra.mxu0 0.0
    %944 = vmatprep.subr.mxu0 0.0
    %945 = vmatpush1.msra.mxu0 0.0
    %946 = vmatprep.subr.mxu0 0.0
    %947 = vmatpush1.msra.mxu0 0.0
    %948 = vmatprep.subr.mxu0 0.0
    %949 = vmatpush1.msra.mxu0 0.0
    %950 = vmatprep.subr.mxu0 0.0
    %951 = vmatpush1.msra.mxu0 0.0
    %952 = vmatprep.subr.mxu0 0.0
    %953 = vmatpush1.msra.mxu0 0.0
    %954 = vmatprep.subr.mxu0 0.0
    %955 = vmatpush1.msra.mxu0 0.0
    %956 = vmatprep.subr.mxu0 0.0
    %957 = vmatpush1.msra.mxu0 0.0
    %958 = vmatprep.subr.mxu0 0.0
    %959 = vmatpush1.msra.mxu0 0.0
    %960 = vmatprep.subr.mxu0 0.0
    %961 = vmatpush1.msra.mxu0 0.0
    %962 = vmatprep.subr.mxu0 0.0
    %963 = vmatpush1.msra.mxu0 0.0
    %964 = vmatprep.subr.mxu0 0.0
    %965 = vmatpush1.msra.mxu0 0.0
    %966 = vmatprep.subr.mxu0 0.0
    %967 = vmatpush1.msra.mxu0 0.0
    %968 = vmatprep.subr.mxu0 0.0
    %969 = vmatpush1.msra.mxu0 0.0
    %970 = vmatprep.subr.mxu0 0.0
    %971 = vmatpush1.msra.mxu0 0.0
    %972 = vmatprep.subr.mxu0 0.0
    %973 = vmatpush1.msra.mxu0 0.0
    %974 = vmatprep.subr.mxu0 0.0
    %975 = vmatpush1.msra.mxu0 0.0
    %976 = vmatprep.subr.mxu0 0.0
    %977 = vmatpush1.msra.mxu0 0.0
    %978 = vmatprep.subr.mxu0 0.0
    %979 = vmatpush1.msra.mxu0 0.0
    %980 = vmatprep.subr.mxu0 0.0
    %981 = vmatpush1.msra.mxu0 0.0
    %982 = vmatprep.subr.mxu0 0.0
    %983 = vmatpush1.msra.mxu0 0.0
    %984 = vmatprep.subr.mxu0 0.0
    %985 = vmatpush1.msra.mxu0 0.0
    %986 = vmatprep.mubr.f32.mxu0 0.0
    %987 = vmatmul.mubr.f32.gmra.mrb[0].mxu0 %v920
    %v988 = vpop.f32.mrb[0].mxu0
    %v989 = vadd.f32 0.0, %v988
    %v990 = vpop.f32.mrb[0].mxu0
    %991 = vdwg.mxu0
    %v992 = vadd.f32 %v211, %v989
    %v993 = vxor.u32 %v992, 2147483648
    %v994 = vmul.f32 %v993, 1.442695
    %v995 = vpow.pop %v994
    %v996 = vadd.f32 %v995, 1.0
    %v997 = vrcp.pop %v996
    %v998 = vmul.f32 1.0, %v997
    %v999 = vtanh.pop %v992
    %v1000 = vmul.f32 %v998, %v910
    %1002 = vrot.lane.b32.xlu0 %v999, 32
    %v1003 = vpop.permute.xlu0 %1002
    %v1005 = vmul.f32 %v998, %v1003
    %1007 = vrot.lane.b32.xlu0 %v1005, 32
    %v1008 = vpop.permute.xlu0 %1007
    %v1010 = vadd.f32 %v1000, %v1008
    %v1011 = vtanh.pop %v1010
    %1013 = vrot.lane.b32.xlu0 %v1011, 32
    %v1014 = vpop.permute.xlu0 %1013
    %v1016 = vmul.f32 %v998, %v1014
    %v1017 = vmax.f32 %v1016, 0.0
    %v1018 = vld [vmem:[%s3] sm:$0xff]
    %v1019 = vld [vmem:[%s3 + $0x8] sm:$0xff]
    %v1020 = vld [vmem:[%s3 + $0x10] sm:$0xff]
    %v1021 = vld [vmem:[%s3 + $0x18] sm:$0xff]
    %v1022 = vld [vmem:[%s4] sm:$0x1]
    %v1024 = vlaneseq
    %v1025 = vshrl.u32 %v1024, 7
    %v1026 = vsub.s32 0, %v1025
    %v1027 = vrot.slane %v1022, %v1026
    %1030 = vrot.lane.b32.xlu0 %v1017, 64
    %v1031 = vpop.permute.xlu0 %1030
    %v1032 = vsel %vm218, %v1031, 0
    %1034 = vmatprep.subr.mxu0 0.0
    %1035 = vmatpush1.msra.mxu0 %v1018
    %1036 = vmatprep.subr.mxu0 0.0
    %1037 = vmatpush1.msra.mxu0 %v1019
    %1038 = vmatprep.subr.mxu0 0.0
    %1039 = vmatpush1.msra.mxu0 %v1020
    %1040 = vmatprep.subr.mxu0 0.0
    %1041 = vmatpush1.msra.mxu0 %v1021
    %1042 = vmatprep.subr.mxu0 0.0
    %1043 = vmatpush1.msra.mxu0 0.0
    %1044 = vmatprep.subr.mxu0 0.0
    %1045 = vmatpush1.msra.mxu0 0.0
    %1046 = vmatprep.subr.mxu0 0.0
    %1047 = vmatpush1.msra.mxu0 0.0
    %1048 = vmatprep.subr.mxu0 0.0
    %1049 = vmatpush1.msra.mxu0 0.0
    %1050 = vmatprep.subr.mxu0 0.0
    %1051 = vmatpush1.msra.mxu0 0.0
    %1052 = vmatprep.subr.mxu0 0.0
    %1053 = vmatpush1.msra.mxu0 0.0
    %1054 = vmatprep.subr.mxu0 0.0
    %1055 = vmatpush1.msra.mxu0 0.0
    %1056 = vmatprep.subr.mxu0 0.0
    %1057 = vmatpush1.msra.mxu0 0.0
    %1058 = vmatprep.subr.mxu0 0.0
    %1059 = vmatpush1.msra.mxu0 0.0
    %1060 = vmatprep.subr.mxu0 0.0
    %1061 = vmatpush1.msra.mxu0 0.0
    %1062 = vmatprep.subr.mxu0 0.0
    %1063 = vmatpush1.msra.mxu0 0.0
    %1064 = vmatprep.subr.mxu0 0.0
    %1065 = vmatpush1.msra.mxu0 0.0
    %1066 = vmatprep.subr.mxu0 0.0
    %1067 = vmatpush1.msra.mxu0 0.0
    %1068 = vmatprep.subr.mxu0 0.0
    %1069 = vmatpush1.msra.mxu0 0.0
    %1070 = vmatprep.subr.mxu0 0.0
    %1071 = vmatpush1.msra.mxu0 0.0
    %1072 = vmatprep.subr.mxu0 0.0
    %1073 = vmatpush1.msra.mxu0 0.0
    %1074 = vmatprep.subr.mxu0 0.0
    %1075 = vmatpush1.msra.mxu0 0.0
    %1076 = vmatprep.subr.mxu0 0.0
    %1077 = vmatpush1.msra.mxu0 0.0
    %1078 = vmatprep.subr.mxu0 0.0
    %1079 = vmatpush1.msra.mxu0 0.0
    %1080 = vmatprep.subr.mxu0 0.0
    %1081 = vmatpush1.msra.mxu0 0.0
    %1082 = vmatprep.subr.mxu0 0.0
    %1083 = vmatpush1.msra.mxu0 0.0
    %1084 = vmatprep.subr.mxu0 0.0
    %1085 = vmatpush1.msra.mxu0 0.0
    %1086 = vmatprep.subr.mxu0 0.0
    %1087 = vmatpush1.msra.mxu0 0.0
    %1088 = vmatprep.subr.mxu0 0.0
    %1089 = vmatpush1.msra.mxu0 0.0
    %1090 = vmatprep.subr.mxu0 0.0
    %1091 = vmatpush1.msra.mxu0 0.0
    %1092 = vmatprep.subr.mxu0 0.0
    %1093 = vmatpush1.msra.mxu0 0.0
    %1094 = vmatprep.subr.mxu0 0.0
    %1095 = vmatpush1.msra.mxu0 0.0
    %1096 = vmatprep.subr.mxu0 0.0
    %1097 = vmatpush1.msra.mxu0 0.0
    %1098 = vmatprep.mubr.f32.mxu0 0.0
    %1099 = vmatmul.mubr.f32.gmra.mrb[0].mxu0 %v1032
    %v1100 = vpop.f32.mrb[0].mxu0
    %v1101 = vadd.f32 %v1027, %v1100
    %v1102 = vpop.f32.mrb[0].mxu0
    %1103 = vdwg.mxu0
    %1104 = vst [vmem:[#allocation5] sm:$0xff] %v1101
    // Predicated region
    $region26: #{tpu_custom_call.1} parent=1 // pred_check
      _
    $region27: #{tpu_custom_call.1} parent=1 // pred_check_branch
      %1106 = sbr.rel (0) target = $region29
    $region28: #{tpu_custom_call.1} parent=1 // pred_region
      %s1108 = ssub.s32 128, 128
      %1109 = vsyncadd [#allocation4], %s1108
      %s1111 = sshll.u32 [#allocation5], 4
      %s1112 = int_to_ptr.vmem [resolvable:$true] %s1111
      %1114 = dma.vmem_to_hbm [thread:$0]  %s1112, 128, %s5, [#allocation4]
    $region29: #{tpu_custom_call.1} parent=1 // pred_fallthru
      _
    // Predicated region
    $region30: #{tpu_custom_call.1} parent=1 // pred_check
      _
    $region31: #{tpu_custom_call.1} parent=1 // pred_check_branch
      %1116 = sbr.rel (0) target = $region33
    $region32: #{tpu_custom_call.1} parent=1 // pred_region
      %1117 = dma.done [#allocation4], 128
    $region33: #{tpu_custom_call.1} parent=1 // pred_fallthru
      _
    %1118 = vsyncpa [#allocation3], 1
    %1119 = vsyncpa [#allocation4], 1

</llo_original>
